<compile_context>
chip_gen: v7x
topology: tpu7x:2x2x1
jax: 0.10.0
libtpu: 0.0.40
codegen_flags: <defaults>
</compile_context>

<pallas_src>
import jax
import jax.numpy as jnp
import numpy as np
from jax.experimental import pallas as pl
from jax.experimental.pallas import tpu as pltpu

USE_TARGET_WEIGHT = True   # config.LOSS.USE_TARGET_WEIGHT
TOPK = 8                   # JointsOHKMMSELoss(topk=8)
OKS_THRES = 0.5            # config.LOSS.OKS_THRES

# Packed-stats lane layout (last dim of the kernel output).
_L_LOSS, _L_MAXP, _L_MAXT, _L_MAXA, _L_IDXP, _L_IDXT, _L_IDXA = range(7)
_NSTATS = 7


def _stats_kernel(out_ref, tgt_ref, ano_ref, w_ref, stats_ref):
    """Per (sample, joint): 0.5*MSE over pixels + argmax/max of the 3 heatmaps."""
    pred = out_ref[...]        # (TB, J, HW) f32
    gt = tgt_ref[...]          # (TB, J, HW) f32
    ano = ano_ref[...]         # (TB, J, HW) f32

    if USE_TARGET_WEIGHT:
        w = w_ref[...]         # (TB, J, 1) -> broadcast over pixels
        # (pred*w - gt*w) == (pred - gt)*w; factored form saves one VPU mul/elem
        # (last-bit rounding may differ from the PyTorch pred.mul(w)-gt.mul(w)).
        diff = (pred - gt) * w
    else:
        diff = pred - gt
    # per-joint loss: 0.5 * mean over pixels of squared error
    loss = 0.5 * jnp.mean(diff * diff, axis=-1, keepdims=True)     # (TB, J, 1)

    hw = pred.shape[-1]
    # Hoist a single lane-index iota; reused by all three argmax computations
    # (JAX does not CSE broadcast_in_dim, so build it exactly once).
    lane = jax.lax.broadcasted_iota(jnp.int32, pred.shape, 2)

    def argmax_max(x):
        m = jnp.max(x, axis=-1, keepdims=True)                      # (TB, J, 1)
        # first-occurrence argmax (matches numpy argmax used by get_max_preds)
        idx = jnp.min(jnp.where(x == m, lane, hw), axis=-1, keepdims=True)
        return idx.astype(jnp.float32), m

    ip, mp = argmax_max(pred)
    it, mt = argmax_max(gt)
    ia, ma = argmax_max(ano)

    # Pack everything into the single consolidated output block.
    stats_ref[:, :, _L_LOSS:_L_LOSS + 1] = loss
    stats_ref[:, :, _L_MAXP:_L_MAXP + 1] = mp
    stats_ref[:, :, _L_MAXT:_L_MAXT + 1] = mt
    stats_ref[:, :, _L_MAXA:_L_MAXA + 1] = ma
    stats_ref[:, :, _L_IDXP:_L_IDXP + 1] = ip
    stats_ref[:, :, _L_IDXT:_L_IDXT + 1] = it
    stats_ref[:, :, _L_IDXA:_L_IDXA + 1] = ia


def _choose_batch_tile(B, J, HW, budget_bytes=4 << 20):
    """Pick a batch tile so each grid step moves ~a few MiB (amortizes the
    ~0.35us per-step overhead) while double-buffered blocks stay comfortably
    inside v7x's smaller VMEM; keep >=2 grid blocks when B>1 so both v7x
    TensorCores get work via the 'parallel' grid axis."""
    per_sample_bytes = (3 * HW + 1 + _NSTATS) * J * 4
    tb = max(1, min(B, budget_bytes // max(per_sample_bytes, 1)))
    if tb >= B and B > 1:
        tb = (B + 1) // 2
    while B % tb != 0:   # keep blocks exact; avoids padded partial tiles
        tb -= 1
    return tb


def _vmem_limit_bytes():
    """Raise the scoped-VMEM limit to ~half the chip's physical VMEM
    (64 MiB on v5e/v6e, 32 MiB on v7x) so larger batch tiles stay
    double-buffered."""
    try:
        cap = int(pltpu.get_tpu_info().vmem_capacity_bytes)
    except Exception:
        cap = 64 << 20
    return int(min(cap // 2, 64 << 20))


def per_joint_stats(output, target, another, target_weight):
    """output/target/another: (B, J, HW) f32; target_weight: (B, J, 1) f32.
    Returns packed stats (B, J, 7) f32."""
    B, J, HW = output.shape
    TB = _choose_batch_tile(B, J, HW)
    grid = (B // TB,)

    hm_spec = pl.BlockSpec((TB, J, HW), lambda b: (b, 0, 0))
    w_spec = pl.BlockSpec((TB, J, 1), lambda b: (b, 0, 0))
    out_spec = pl.BlockSpec((TB, J, _NSTATS), lambda b: (b, 0, 0))

    # Advisory cost estimate so XLA can overlap this small custom call with
    # the surrounding top-k / OKS glue.
    cost = pl.CostEstimate(
        flops=8 * 3 * B * J * HW,
        transcendentals=0,
        bytes_accessed=(3 * B * J * HW + B * J * (1 + _NSTATS)) * 4,
    )

    return pl.pallas_call(
        _stats_kernel,
        out_shape=jax.ShapeDtypeStruct((B, J, _NSTATS), jnp.float32),
        grid=grid,
        in_specs=[hm_spec, hm_spec, hm_spec, w_spec],
        out_specs=out_spec,
        compiler_params=pltpu.CompilerParams(
            dimension_semantics=("parallel",),
            vmem_limit_bytes=_vmem_limit_bytes(),
        ),
        cost_estimate=cost,
    )(output, target, another, target_weight)


def joints_ocks_mse_loss(output, target, another_target, target_weight,
                         scale, joints_vis):
    """Equivalent of JointsOCKSMSELoss.forward.

    output/target/another_target: (B, J, H, W) f32
    target_weight: (B, J, 1) f32
    scale: (B, 2) f32        (meta['scale'])
    joints_vis: (B, J, 3) f32 (meta['joints_vis'])
    """
    B, J, H, W = output.shape
    HW = H * W
    # NOTE: if upstream heatmaps exist in bf16, pass them through as bf16 and
    # upcast inside the kernel to halve HBM traffic; inputs here are already f32.
    o = output.reshape(B, J, HW).astype(jnp.float32)
    t = target.reshape(B, J, HW).astype(jnp.float32)
    a = another_target.reshape(B, J, HW).astype(jnp.float32)
    tw = target_weight.astype(jnp.float32)

    stats = per_joint_stats(o, t, a, tw)          # (B, J, 7)
    loss2d = stats[..., _L_LOSS]                  # (B, J)
    mp, mt, ma = stats[..., _L_MAXP], stats[..., _L_MAXT], stats[..., _L_MAXA]
    ip, it, ia = stats[..., _L_IDXP], stats[..., _L_IDXT], stats[..., _L_IDXA]

    # ---- OHKM branch (JointsOHKMMSELoss): sum of top-k per-joint losses / k, mean over batch
    topk_vals, _ = jax.lax.top_k(loss2d, TOPK)
    ohkm_loss = jnp.mean(jnp.sum(topk_vals, axis=-1) / float(TOPK))

    # ---- get_max_preds: coords from argmax, zeroed where maxval <= 0
    def coords(idxf, maxv):
        x = jnp.mod(idxf, float(W))
        y = jnp.floor(idxf / float(W))
        p = jnp.stack([x, y], axis=-1)                        # (B, J, 2)
        mask = (maxv > 0.0).astype(jnp.float32)[..., None]
        return p * mask

    pred_c = coords(ip, mp)
    tgt_c = coords(it, mt)
    ano_c = coords(ia, ma)

    # ---- OKS (computeOks, batched)
    sigmas = jnp.array([0.79, 0.79, 0.72, 0.72, 0.62, 0.62, 1.07, 1.07,
                        0.87, 0.87, 0.89, 0.89, 0.79, 0.79], jnp.float32) / 10.0
    vars_ = (sigmas * 2.0) ** 2
    area = scale[:, 0] * 160.0 * scale[:, 1] * 160.0          # per reference: scale*160
    tmparea = area * 0.53
    eps = jnp.float32(np.spacing(1))
    vg = joints_vis[:, :, 0]                                  # (B, J)

    def oks(dt, gt):
        dx = dt[..., 0] - gt[..., 0]
        dy = dt[..., 1] - gt[..., 1]
        e = (dx ** 2 + dy ** 2) / vars_[None, :] / (tmparea[:, None] + eps) / 2.0
        ious = jnp.exp(-e)
        return jnp.where(vg == 0, 0.0, ious)

    iou_target = oks(pred_c, tgt_c)
    iou_another = oks(pred_c, ano_c)
    confused = (iou_target < OKS_THRES) & (iou_another > OKS_THRES)   # (B, J)

    # ---- OCKS: per-sample sum of per-joint losses + mean of confused joints
    num = jnp.sum(confused.astype(jnp.int32), axis=-1)        # (B,)
    sub_sum = jnp.sum(loss2d, axis=-1)                        # (B,)
    masked_sum = jnp.sum(jnp.where(confused, loss2d, 0.0), axis=-1)
    extra = jnp.where(num > 0,
                      masked_sum / jnp.maximum(num, 1).astype(jnp.float32),
                      0.0)
    ocks_loss = jnp.mean(sub_sum + extra)
    # TODO(synk): stateful self.confusedCount / self.confusedMask python-side counters not reproduced.

    return ohkm_loss + ocks_loss


if __name__ == "__main__":
    key = jax.random.PRNGKey(0)
    B, J, H, W = 2, 14, 16, 16   # 14 joints (sigmas has 14 entries)
    k1, k2, k3, k4, k5, k6 = jax.random.split(key, 6)
    output = jax.random.normal(k1, (B, J, H, W), jnp.float32)
    target = jax.random.normal(k2, (B, J, H, W), jnp.float32)
    another_target = jax.random.normal(k3, (B, J, H, W), jnp.float32)
    target_weight = jax.random.uniform(k4, (B, J, 1), jnp.float32)
    scale = jax.random.uniform(k5, (B, 2), jnp.float32, minval=0.5, maxval=2.0)
    joints_vis = (jax.random.uniform(k6, (B, J, 3)) > 0.2).astype(jnp.float32)

    result = jax.jit(joints_ocks_mse_loss)(
        output, target, another_target, target_weight, scale, joints_vis)
    jax.block_until_ready(result)
    assert result.shape == () and jnp.isfinite(result)
    print("KERNEL_OK")
</pallas_src>

<mosaic_0001>
module attributes {stable_mosaic.version = 11 : i64} {
  func.func @_stats_kernel(%arg0: i32, %arg1: memref<1x14x256xf32, #tpu.memory_space<vmem>>, %arg2: memref<1x14x256xf32, #tpu.memory_space<vmem>>, %arg3: memref<1x14x256xf32, #tpu.memory_space<vmem>>, %arg4: memref<1x14x1xf32, #tpu.memory_space<vmem>>, %arg5: memref<1x14x7xf32, #tpu.memory_space<vmem>>) attributes {dimension_semantics = [#tpu.dimension_semantics<parallel>], iteration_bounds = array<i64: 2>, scalar_prefetch = 0 : i64, scratch_operands = 0 : i64, tpu.core_type = #tpu.core_type<tc>, window_params = [{transform_indices = @transform_0, window_bounds = array<i64: 1, 14, 256>}, {transform_indices = @transform_1, window_bounds = array<i64: 1, 14, 256>}, {transform_indices = @transform_2, window_bounds = array<i64: 1, 14, 256>}, {transform_indices = @transform_3, window_bounds = array<i64: 1, 14, 1>}, {transform_indices = @transform_4, window_bounds = array<i64: 1, 14, 7>}]} {
    %c0 = arith.constant 0 : index
    %c0_0 = arith.constant 0 : index
    %c0_1 = arith.constant 0 : index
    %0 = vector.load %arg1[%c0, %c0_0, %c0_1] : memref<1x14x256xf32, #tpu.memory_space<vmem>>, vector<1x14x256xf32>
    %c0_2 = arith.constant 0 : index
    %c0_3 = arith.constant 0 : index
    %c0_4 = arith.constant 0 : index
    %1 = vector.load %arg2[%c0_2, %c0_3, %c0_4] : memref<1x14x256xf32, #tpu.memory_space<vmem>>, vector<1x14x256xf32>
    %c0_5 = arith.constant 0 : index
    %c0_6 = arith.constant 0 : index
    %c0_7 = arith.constant 0 : index
    %2 = vector.load %arg3[%c0_5, %c0_6, %c0_7] : memref<1x14x256xf32, #tpu.memory_space<vmem>>, vector<1x14x256xf32>
    %c0_8 = arith.constant 0 : index
    %c0_9 = arith.constant 0 : index
    %c0_10 = arith.constant 0 : index
    %3 = vector.load %arg4[%c0_8, %c0_9, %c0_10] : memref<1x14x1xf32, #tpu.memory_space<vmem>>, vector<1x14x1xf32>
    %4 = arith.subf %0, %1 : vector<1x14x256xf32>
    %5 = vector.broadcast %3 : vector<1x14x1xf32> to vector<1x14x256xf32>
    %6 = arith.mulf %4, %5 : vector<1x14x256xf32>
    %7 = arith.mulf %6, %6 : vector<1x14x256xf32>
    %cst = arith.constant dense<0.000000e+00> : vector<1x14xf32>
    %8 = vector.multi_reduction <add>, %7, %cst [2] : vector<1x14x256xf32> to vector<1x14xf32>
    %9 = vector.shape_cast %8 : vector<1x14xf32> to vector<1x14x1xf32>
    %cst_11 = arith.constant 2.560000e+02 : f32
    %10 = vector.broadcast %cst_11 : f32 to vector<1x14x1xf32>
    %11 = arith.divf %9, %10 : vector<1x14x1xf32>
    %cst_12 = arith.constant 5.000000e-01 : f32
    %12 = vector.broadcast %cst_12 : f32 to vector<1x14x1xf32>
    %13 = arith.mulf %12, %11 : vector<1x14x1xf32>
    %14 = tpu.iota {dimensions = array<i32: 2>} : vector<1x14x256xi32>
    %cst_13 = arith.constant dense<0xFF800000> : vector<1x14xf32>
    %15 = vector.multi_reduction <maximumf>, %0, %cst_13 [2] : vector<1x14x256xf32> to vector<1x14xf32>
    %16 = vector.shape_cast %15 : vector<1x14xf32> to vector<1x14x1xf32>
    %17 = vector.broadcast %16 : vector<1x14x1xf32> to vector<1x14x256xf32>
    %18 = arith.cmpf oeq, %0, %17 : vector<1x14x256xf32>
    %c256_i32 = arith.constant 256 : i32
    %19 = vector.broadcast %c256_i32 : i32 to vector<1x14x256xi32>
    %20 = arith.select %18, %14, %19 : vector<1x14x256xi1>, vector<1x14x256xi32>
    %cst_14 = arith.constant dense<2147483647> : vector<1x14xi32>
    %21 = vector.multi_reduction <minsi>, %20, %cst_14 [2] : vector<1x14x256xi32> to vector<1x14xi32>
    %22 = vector.shape_cast %21 : vector<1x14xi32> to vector<1x14x1xi32>
    %23 = arith.sitofp %22 : vector<1x14x1xi32> to vector<1x14x1xf32>
    %cst_15 = arith.constant dense<0xFF800000> : vector<1x14xf32>
    %24 = vector.multi_reduction <maximumf>, %1, %cst_15 [2] : vector<1x14x256xf32> to vector<1x14xf32>
    %25 = vector.shape_cast %24 : vector<1x14xf32> to vector<1x14x1xf32>
    %26 = vector.broadcast %25 : vector<1x14x1xf32> to vector<1x14x256xf32>
    %27 = arith.cmpf oeq, %1, %26 : vector<1x14x256xf32>
    %c256_i32_16 = arith.constant 256 : i32
    %28 = vector.broadcast %c256_i32_16 : i32 to vector<1x14x256xi32>
    %29 = arith.select %27, %14, %28 : vector<1x14x256xi1>, vector<1x14x256xi32>
    %cst_17 = arith.constant dense<2147483647> : vector<1x14xi32>
    %30 = vector.multi_reduction <minsi>, %29, %cst_17 [2] : vector<1x14x256xi32> to vector<1x14xi32>
    %31 = vector.shape_cast %30 : vector<1x14xi32> to vector<1x14x1xi32>
    %32 = arith.sitofp %31 : vector<1x14x1xi32> to vector<1x14x1xf32>
    %cst_18 = arith.constant dense<0xFF800000> : vector<1x14xf32>
    %33 = vector.multi_reduction <maximumf>, %2, %cst_18 [2] : vector<1x14x256xf32> to vector<1x14xf32>
    %34 = vector.shape_cast %33 : vector<1x14xf32> to vector<1x14x1xf32>
    %35 = vector.broadcast %34 : vector<1x14x1xf32> to vector<1x14x256xf32>
    %36 = arith.cmpf oeq, %2, %35 : vector<1x14x256xf32>
    %c256_i32_19 = arith.constant 256 : i32
    %37 = vector.broadcast %c256_i32_19 : i32 to vector<1x14x256xi32>
    %38 = arith.select %36, %14, %37 : vector<1x14x256xi1>, vector<1x14x256xi32>
    %cst_20 = arith.constant dense<2147483647> : vector<1x14xi32>
    %39 = vector.multi_reduction <minsi>, %38, %cst_20 [2] : vector<1x14x256xi32> to vector<1x14xi32>
    %40 = vector.shape_cast %39 : vector<1x14xi32> to vector<1x14x1xi32>
    %41 = arith.sitofp %40 : vector<1x14x1xi32> to vector<1x14x1xf32>
    %c0_21 = arith.constant 0 : index
    %c0_22 = arith.constant 0 : index
    %c0_23 = arith.constant 0 : index
    %42 = vector.load %arg5[%c0_21, %c0_22, %c0_23] : memref<1x14x7xf32, #tpu.memory_space<vmem>>, vector<1x14x1xf32>
    tpu.vector_store %arg5[%c0_21, %c0_22, %c0_23], %13 {strides = array<i32>} : memref<1x14x7xf32, #tpu.memory_space<vmem>>, vector<1x14x1xf32>,
    %c0_24 = arith.constant 0 : index
    %c0_25 = arith.constant 0 : index
    %c1 = arith.constant 1 : index
    %43 = vector.load %arg5[%c0_24, %c0_25, %c1] : memref<1x14x7xf32, #tpu.memory_space<vmem>>, vector<1x14x1xf32>
    tpu.vector_store %arg5[%c0_24, %c0_25, %c1], %16 {strides = array<i32>} : memref<1x14x7xf32, #tpu.memory_space<vmem>>, vector<1x14x1xf32>,
    %c0_26 = arith.constant 0 : index
    %c0_27 = arith.constant 0 : index
    %c2 = arith.constant 2 : index
    %44 = vector.load %arg5[%c0_26, %c0_27, %c2] : memref<1x14x7xf32, #tpu.memory_space<vmem>>, vector<1x14x1xf32>
    tpu.vector_store %arg5[%c0_26, %c0_27, %c2], %25 {strides = array<i32>} : memref<1x14x7xf32, #tpu.memory_space<vmem>>, vector<1x14x1xf32>,
    %c0_28 = arith.constant 0 : index
    %c0_29 = arith.constant 0 : index
    %c3 = arith.constant 3 : index
    %45 = vector.load %arg5[%c0_28, %c0_29, %c3] : memref<1x14x7xf32, #tpu.memory_space<vmem>>, vector<1x14x1xf32>
    tpu.vector_store %arg5[%c0_28, %c0_29, %c3], %34 {strides = array<i32>} : memref<1x14x7xf32, #tpu.memory_space<vmem>>, vector<1x14x1xf32>,
    %c0_30 = arith.constant 0 : index
    %c0_31 = arith.constant 0 : index
    %c4 = arith.constant 4 : index
    %46 = vector.load %arg5[%c0_30, %c0_31, %c4] : memref<1x14x7xf32, #tpu.memory_space<vmem>>, vector<1x14x1xf32>
    tpu.vector_store %arg5[%c0_30, %c0_31, %c4], %23 {strides = array<i32>} : memref<1x14x7xf32, #tpu.memory_space<vmem>>, vector<1x14x1xf32>,
    %c0_32 = arith.constant 0 : index
    %c0_33 = arith.constant 0 : index
    %c5 = arith.constant 5 : index
    %47 = vector.load %arg5[%c0_32, %c0_33, %c5] : memref<1x14x7xf32, #tpu.memory_space<vmem>>, vector<1x14x1xf32>
    tpu.vector_store %arg5[%c0_32, %c0_33, %c5], %32 {strides = array<i32>} : memref<1x14x7xf32, #tpu.memory_space<vmem>>, vector<1x14x1xf32>,
    %c0_34 = arith.constant 0 : index
    %c0_35 = arith.constant 0 : index
    %c6 = arith.constant 6 : index
    %48 = vector.load %arg5[%c0_34, %c0_35, %c6] : memref<1x14x7xf32, #tpu.memory_space<vmem>>, vector<1x14x1xf32>
    tpu.vector_store %arg5[%c0_34, %c0_35, %c6], %41 {strides = array<i32>} : memref<1x14x7xf32, #tpu.memory_space<vmem>>, vector<1x14x1xf32>,
    return
  }
  func.func @transform_0(%arg0: i32) -> (i32, i32, i32) {
    %c0_i32 = arith.constant 0 : i32
    %c0_i32_0 = arith.constant 0 : i32
    %c0_i32_1 = arith.constant 0 : i32
    return %arg0, %c0_i32, %c0_i32_0 : i32, i32, i32
  }
  func.func @transform_1(%arg0: i32) -> (i32, i32, i32) {
    %c0_i32 = arith.constant 0 : i32
    %c0_i32_0 = arith.constant 0 : i32
    %c0_i32_1 = arith.constant 0 : i32
    return %arg0, %c0_i32, %c0_i32_0 : i32, i32, i32
  }
  func.func @transform_2(%arg0: i32) -> (i32, i32, i32) {
    %c0_i32 = arith.constant 0 : i32
    %c0_i32_0 = arith.constant 0 : i32
    %c0_i32_1 = arith.constant 0 : i32
    return %arg0, %c0_i32, %c0_i32_0 : i32, i32, i32
  }
  func.func @transform_3(%arg0: i32) -> (i32, i32, i32) {
    %c0_i32 = arith.constant 0 : i32
    %c0_i32_0 = arith.constant 0 : i32
    %c0_i32_1 = arith.constant 0 : i32
    return %arg0, %c0_i32, %c0_i32_0 : i32, i32, i32
  }
  func.func @transform_4(%arg0: i32) -> (i32, i32, i32) {
    %c0_i32 = arith.constant 0 : i32
    %c0_i32_0 = arith.constant 0 : i32
    %c0_i32_1 = arith.constant 0 : i32
    return %arg0, %c0_i32, %c0_i32_0 : i32, i32, i32
  }
}

</mosaic_0001>

<llo_original>
// kernel: joints_ocks_mse_loss.1
$region0: #{joints_ocks_mse_loss.1}
  #allocation0 [shape = 'u32[]', space=smem, size = 0x4, offset = 0x4, fixed_abs, tag = 'smem constant byte address 0x4 - core index']
  #allocation1 [shape = 'u32[144,128]{1,0:T(1,128)}', space=vmem, size = 0x12000, scoped, tag = 'internal scratch']
  %s0 = inlined_call_operand.vmem [shape: f32[2,14,256], index: 0, kind: input, shape index: {}]
  %s1 = inlined_call_operand.vmem [shape: f32[2,14,256], index: 1, kind: input, shape index: {}]
  %s2 = inlined_call_operand.vmem [shape: f32[2,14,256], index: 2, kind: input, shape index: {}]
  %s3 = inlined_call_operand.vmem [shape: f32[2,14,1], index: 3, kind: input, shape index: {}]
  %s4 = inlined_call_operand.vmem [shape: f32[2,14,7], index: 4, kind: output, shape index: {}]
  %s5 = sld [smem:[#allocation0]]
  $region49: #{joints_ocks_mse_loss.1} parent=0
    _
  %s7 = ssub.s32 1, %s5
  %s8 = scalar_select 0, %s7, %s5
  loop: start=0, step=1, limit=4
  $region2: #{joints_ocks_mse_loss.1} parent=0 // loop_pre_header
    _
  $region3: #{joints_ocks_mse_loss.1} parent=0 // loop_header
    %s10 = sphi 0, %s14
    %p11 = scmp.ge.s32.totalorder %s10, 4
    %s20 = sphi 0, %s22
    %s23 = sphi 0, %s20
    %s24 = sphi 0, %s23
    %s40 = sphi 0, %s24
    %s46 = sphi 0, %s48
    %s49 = sphi 0, %s46
    %s50 = sphi 0, %s49
    %s66 = sphi 0, %s50
    %s72 = sphi 0, %s74
    %s75 = sphi 0, %s72
    %s76 = sphi 0, %s75
    %s92 = sphi 0, %s76
    %s98 = sphi 0, %s100
    %s101 = sphi 0, %s98
    %s102 = sphi 0, %s101
    %s118 = sphi 0, %s102
    %s124 = sphi 0, %s126
    %s127 = sphi 0, %s124
    %s128 = sphi 0, %s127
    %s144 = sphi 0, %s128
  $region4: #{joints_ocks_mse_loss.1} parent=0 // loop_header_branch
    %13 = sbr.rel (%p11) target = $region8
  $region5: #{joints_ocks_mse_loss.1} parent=0 // loop_body
    %s15 = ssub.s32 %s10, 1
    %s16 = ssub.s32 %s10, 2
    %s17 = sadd.s32 %s10, 1
    %s18 = ssub.s32 %s10, %s17
    %p19 = scmp.eq.s32.totalorder %s18, 0
    %s21 = sadd.s32 %s20, 1
    %s22 = scalar_select %p19, %s20, %s21
    %p25 = pneg %p19
    %p26 = scmp.eq.s32.totalorder %s10, 1
    %p27 = por %p25, %p26
    %p28 = scmp.ne.s32.totalorder %s20, %s23
    %p29 = scmp.eq.s32.totalorder %s10, 0
    %p30 = por %p28, %p29
    %p31 = scmp.ne.s32.totalorder %s20, %s23
    %p32 = scmp.eq.s32.totalorder %s15, 1
    %p33 = por %p31, %p32
    %p34 = scmp.ne.s32.totalorder %s23, %s24
    %p35 = scmp.eq.s32.totalorder %s15, 0
    %p36 = por %p34, %p35
    %p37 = scmp.ne.s32.totalorder %s23, %s24
    %p38 = scmp.eq.s32.totalorder %s16, 1
    %p39 = por %p37, %p38
    %p41 = scmp.ne.s32.totalorder %s24, %s40
    %p42 = scmp.eq.s32.totalorder %s16, 0
    %p43 = por %p41, %p42
    %s44 = ssub.s32 %s10, %s17
    %p45 = scmp.eq.s32.totalorder %s44, 0
    %s47 = sadd.s32 %s46, 1
    %s48 = scalar_select %p45, %s46, %s47
    %p51 = pneg %p45
    %p52 = scmp.eq.s32.totalorder %s10, 1
    %p53 = por %p51, %p52
    %p54 = scmp.ne.s32.totalorder %s46, %s49
    %p55 = scmp.eq.s32.totalorder %s10, 0
    %p56 = por %p54, %p55
    %p57 = scmp.ne.s32.totalorder %s46, %s49
    %p58 = scmp.eq.s32.totalorder %s15, 1
    %p59 = por %p57, %p58
    %p60 = scmp.ne.s32.totalorder %s49, %s50
    %p61 = scmp.eq.s32.totalorder %s15, 0
    %p62 = por %p60, %p61
    %p63 = scmp.ne.s32.totalorder %s49, %s50
    %p64 = scmp.eq.s32.totalorder %s16, 1
    %p65 = por %p63, %p64
    %p67 = scmp.ne.s32.totalorder %s50, %s66
    %p68 = scmp.eq.s32.totalorder %s16, 0
    %p69 = por %p67, %p68
    %s70 = ssub.s32 %s10, %s17
    %p71 = scmp.eq.s32.totalorder %s70, 0
    %s73 = sadd.s32 %s72, 1
    %s74 = scalar_select %p71, %s72, %s73
    %p77 = pneg %p71
    %p78 = scmp.eq.s32.totalorder %s10, 1
    %p79 = por %p77, %p78
    %p80 = scmp.ne.s32.totalorder %s72, %s75
    %p81 = scmp.eq.s32.totalorder %s10, 0
    %p82 = por %p80, %p81
    %p83 = scmp.ne.s32.totalorder %s72, %s75
    %p84 = scmp.eq.s32.totalorder %s15, 1
    %p85 = por %p83, %p84
    %p86 = scmp.ne.s32.totalorder %s75, %s76
    %p87 = scmp.eq.s32.totalorder %s15, 0
    %p88 = por %p86, %p87
    %p89 = scmp.ne.s32.totalorder %s75, %s76
    %p90 = scmp.eq.s32.totalorder %s16, 1
    %p91 = por %p89, %p90
    %p93 = scmp.ne.s32.totalorder %s76, %s92
    %p94 = scmp.eq.s32.totalorder %s16, 0
    %p95 = por %p93, %p94
    %s96 = ssub.s32 %s10, %s17
    %p97 = scmp.eq.s32.totalorder %s96, 0
    %s99 = sadd.s32 %s98, 1
    %s100 = scalar_select %p97, %s98, %s99
    %p103 = pneg %p97
    %p104 = scmp.eq.s32.totalorder %s10, 1
    %p105 = por %p103, %p104
    %p106 = scmp.ne.s32.totalorder %s98, %s101
    %p107 = scmp.eq.s32.totalorder %s10, 0
    %p108 = por %p106, %p107
    %p109 = scmp.ne.s32.totalorder %s98, %s101
    %p110 = scmp.eq.s32.totalorder %s15, 1
    %p111 = por %p109, %p110
    %p112 = scmp.ne.s32.totalorder %s101, %s102
    %p113 = scmp.eq.s32.totalorder %s15, 0
    %p114 = por %p112, %p113
    %p115 = scmp.ne.s32.totalorder %s101, %s102
    %p116 = scmp.eq.s32.totalorder %s16, 1
    %p117 = por %p115, %p116
    %p119 = scmp.ne.s32.totalorder %s102, %s118
    %p120 = scmp.eq.s32.totalorder %s16, 0
    %p121 = por %p119, %p120
    %s122 = ssub.s32 %s10, %s17
    %p123 = scmp.eq.s32.totalorder %s122, 0
    %s125 = sadd.s32 %s124, 1
    %s126 = scalar_select %p123, %s124, %s125
    %p129 = pneg %p123
    %p130 = scmp.eq.s32.totalorder %s10, 1
    %p131 = por %p129, %p130
    %p132 = scmp.ne.s32.totalorder %s124, %s127
    %p133 = scmp.eq.s32.totalorder %s10, 0
    %p134 = por %p132, %p133
    %p135 = scmp.ne.s32.totalorder %s124, %s127
    %p136 = scmp.eq.s32.totalorder %s15, 1
    %p137 = por %p135, %p136
    %p138 = scmp.ne.s32.totalorder %s127, %s128
    %p139 = scmp.eq.s32.totalorder %s15, 0
    %p140 = por %p138, %p139
    %p141 = scmp.ne.s32.totalorder %s127, %s128
    %p142 = scmp.eq.s32.totalorder %s16, 1
    %p143 = por %p141, %p142
    %p145 = scmp.ne.s32.totalorder %s128, %s144
    %p146 = scmp.eq.s32.totalorder %s16, 0
    %p147 = por %p145, %p146
    %p148 = scmp.le.s32.totalorder 1, %s10
    %p149 = scmp.lt.s32.totalorder %s10, 3
    %p150 = pnand %p148, %p149
    %p151 = pneg %p150
    // Predicated region
    $region9: #{joints_ocks_mse_loss.1} parent=5 // pred_check
      _
    $region10: #{joints_ocks_mse_loss.1} parent=5 // pred_check_branch
      %153 = sbr.rel (%p150) target = $region12
    $region11: #{joints_ocks_mse_loss.1} parent=5 // pred_region
      %s154 = ssub.s32 %s10, 1
    $region12: #{joints_ocks_mse_loss.1} parent=5 // pred_fallthru
      _
    %p155 = scmp.lt.s32.totalorder %s10, 2
    // Predicated region
    $region13: #{joints_ocks_mse_loss.1} parent=5 // pred_check
      %p156 = pneg %p155
    $region14: #{joints_ocks_mse_loss.1} parent=5 // pred_check_branch
      %158 = sbr.rel (%p156) target = $region16
    $region15: #{joints_ocks_mse_loss.1} parent=5 // pred_region
      // Predicated region
      $region17: #{joints_ocks_mse_loss.1} parent=15 // pred_check
        %p159 = pneg %p30
      $region18: #{joints_ocks_mse_loss.1} parent=15 // pred_check_branch
        %161 = sbr.rel (%p159) target = $region20
      $region19: #{joints_ocks_mse_loss.1} parent=15 // pred_region
        %p162 = scmp.lt.s32.totalorder %s10, 1
        %s163 = scalar_select %p162, %s10, 1
        %s164 = smul.addr %s163, 4
        %s165 = smul.addr %s164, 8
        %s166 = scalar_lea.vmem %s0, %s165
      $region20: #{joints_ocks_mse_loss.1} parent=15 // pred_fallthru
        _
      // Predicated region
      $region21: #{joints_ocks_mse_loss.1} parent=15 // pred_check
        %p167 = pneg %p56
      $region22: #{joints_ocks_mse_loss.1} parent=15 // pred_check_branch
        %169 = sbr.rel (%p167) target = $region24
      $region23: #{joints_ocks_mse_loss.1} parent=15 // pred_region
        %p170 = scmp.lt.s32.totalorder %s10, 1
        %s171 = scalar_select %p170, %s10, 1
        %s172 = smul.addr %s171, 4
        %s173 = smul.addr %s172, 8
        %s174 = scalar_lea.vmem %s1, %s173
      $region24: #{joints_ocks_mse_loss.1} parent=15 // pred_fallthru
        _
      // Predicated region
      $region25: #{joints_ocks_mse_loss.1} parent=15 // pred_check
        %p175 = pneg %p82
      $region26: #{joints_ocks_mse_loss.1} parent=15 // pred_check_branch
        %177 = sbr.rel (%p175) target = $region28
      $region27: #{joints_ocks_mse_loss.1} parent=15 // pred_region
        %p178 = scmp.lt.s32.totalorder %s10, 1
        %s179 = scalar_select %p178, %s10, 1
        %s180 = smul.addr %s179, 4
        %s181 = smul.addr %s180, 8
        %s182 = scalar_lea.vmem %s2, %s181
      $region28: #{joints_ocks_mse_loss.1} parent=15 // pred_fallthru
        _
      // Predicated region
      $region29: #{joints_ocks_mse_loss.1} parent=15 // pred_check
        %p183 = pneg %p108
      $region30: #{joints_ocks_mse_loss.1} parent=15 // pred_check_branch
        %185 = sbr.rel (%p183) target = $region32
      $region31: #{joints_ocks_mse_loss.1} parent=15 // pred_region
        %p186 = scmp.lt.s32.totalorder %s10, 1
        %s187 = scalar_select %p186, %s10, 1
        %s188 = smul.addr %s187, 2
        %s189 = smul.addr %s188, 8
        %s190 = scalar_lea.vmem %s3, %s189
      $region32: #{joints_ocks_mse_loss.1} parent=15 // pred_fallthru
        _
    $region16: #{joints_ocks_mse_loss.1} parent=5 // pred_fallthru
      _
    %p191 = scmp.le.s32.totalorder 1, %s10
    %p192 = scmp.lt.s32.totalorder %s10, 3
    %p193 = pnand %p191, %p192
    %p194 = pneg %p193
    // Predicated region
    $region33: #{joints_ocks_mse_loss.1} parent=5 // pred_check
      _
    $region34: #{joints_ocks_mse_loss.1} parent=5 // pred_check_branch
      %196 = sbr.rel (%p193) target = $region36
    $region35: #{joints_ocks_mse_loss.1} parent=5 // pred_region
      %s197 = ssub.s32 %s10, 1
      %p198 = scmp.lt.s32.totalorder %s15, 1
      %s199 = scalar_select %p198, %s15, 1
      %s200 = smul.addr %s199, 4
      %s201 = smul.addr %s200, 8
      %s202 = scalar_lea.vmem %s0, %s201
      %p203 = pneg %p36
      %p204 = pneg %p33
      %p205 = scmp.lt.s32.totalorder %s15, 1
      %s206 = scalar_select %p205, %s15, 1
      %s207 = smul.addr %s206, 4
      %s208 = smul.addr %s207, 8
      %s209 = scalar_lea.vmem %s1, %s208
      %p210 = pneg %p62
      %p211 = pneg %p59
      %p212 = scmp.lt.s32.totalorder %s15, 1
      %s213 = scalar_select %p212, %s15, 1
      %s214 = smul.addr %s213, 4
      %s215 = smul.addr %s214, 8
      %s216 = scalar_lea.vmem %s2, %s215
      %p217 = pneg %p88
      %p218 = pneg %p85
      %p219 = scmp.lt.s32.totalorder %s15, 1
      %s220 = scalar_select %p219, %s15, 1
      %s221 = smul.addr %s220, 2
      %s222 = smul.addr %s221, 8
      %s223 = scalar_lea.vmem %s3, %s222
      %p224 = pneg %p114
      %p225 = pneg %p111
      %p226 = pneg %p140
      %p227 = pneg %p137
      %p228 = scmp.lt.s32.totalorder %s15, 1
      %s229 = scalar_select %p228, %s15, 1
      %s230 = smul.addr %s229, 2
      %s231 = smul.addr %s230, 8
      %s232 = scalar_lea.vmem %s4, %s231
      %p233 = scmp.lt.s32.totalorder %s15, 1
      %s234 = scalar_select %p233, %s15, 1
      %s235 = smul.addr %s234, 4
      %s236 = smul.addr %s235, 8
      %s237 = scalar_lea.vmem %s0, %s236
      %p238 = scmp.lt.s32.totalorder %s15, 1
      %s239 = scalar_select %p238, %s15, 1
      %s240 = smul.addr %s239, 4
      %s241 = smul.addr %s240, 8
      %s242 = scalar_lea.vmem %s1, %s241
      %p243 = scmp.lt.s32.totalorder %s15, 1
      %s244 = scalar_select %p243, %s15, 1
      %s245 = smul.addr %s244, 4
      %s246 = smul.addr %s245, 8
      %s247 = scalar_lea.vmem %s2, %s246
      %p248 = scmp.lt.s32.totalorder %s15, 1
      %s249 = scalar_select %p248, %s15, 1
      %s250 = smul.addr %s249, 2
      %s251 = smul.addr %s250, 8
      %s252 = scalar_lea.vmem %s3, %s251
      %p253 = scmp.lt.s32.totalorder %s15, 1
      %s254 = scalar_select %p253, %s15, 1
      %s255 = smul.addr %s254, 2
      %s256 = smul.addr %s255, 8
      %s257 = scalar_lea.vmem %s4, %s256
      %v258 = vld [vmem:[%s237] sm:$0xff]
      %v259 = vld [vmem:[%s237 + $0x8] sm:$0xff]
      %v260 = vld [vmem:[%s237 + $0x10] sm:$0x3f]
      %v261 = vld [vmem:[%s237 + $0x18] sm:$0x3f]
      %v262 = vld [vmem:[%s242] sm:$0xff]
      %v263 = vld [vmem:[%s242 + $0x8] sm:$0xff]
      %v264 = vld [vmem:[%s242 + $0x10] sm:$0x3f]
      %v265 = vld [vmem:[%s242 + $0x18] sm:$0x3f]
      %v266 = vld [vmem:[%s247] sm:$0xff]
      %v267 = vld [vmem:[%s247 + $0x8] sm:$0xff]
      %v268 = vld [vmem:[%s247 + $0x10] sm:$0x3f]
      %v269 = vld [vmem:[%s247 + $0x18] sm:$0x3f]
      %v270 = vld [vmem:[%s252] sm:$0xff]
      %v271 = vld [vmem:[%s252 + $0x8] sm:$0x3f]
      %v272 = vsub.f32 %v258, %v262
      %v273 = vsub.f32 %v259, %v263
      %v274 = vsub.f32 %v260, %v264
      %v275 = vsub.f32 %v261, %v265
      %277 = vset.pattern.permute.xlu0 0
      %278 = vperm.xlu0 %277, %v270
      %v279 = vpop.permute.xlu0 %278
      %282 = vset.pattern.permute.xlu0 0
      %283 = vperm.xlu0 %282, %v271
      %v284 = vpop.permute.xlu0 %283
      %v286 = vmul.f32 %v272, %v279
      %v287 = vmul.f32 %v273, %v279
      %v288 = vmul.f32 %v274, %v284
      %v289 = vmul.f32 %v275, %v284
      %v290 = vmul.f32 %v286, %v286
      %v291 = vmul.f32 %v287, %v287
      %v292 = vmul.f32 %v288, %v288
      %v293 = vmul.f32 %v289, %v289
      %v294 = vadd.f32 %v290, %v291
      %295 = vadd.xlane.f32.xlu0 %v294
      %v296 = vpop.xlane.xlu0 %295
      %vm297 = vcmask 1045504
      %v298 = vsel %vm297, %v292, 0.0
      %v299 = vsel %vm297, %v293, 0.0
      %v300 = vadd.f32 %v298, %v299
      %301 = vadd.xlane.f32.xlu0 %v300
      %v302 = vpop.xlane.xlu0 %301
      %v303 = vrcp.pop 256.0
      %v304 = vmul.f32 %v296, %v303
      %v305 = vmul.f32 %v302, %v303
      %v306 = vmul.f32 %v304, 0.5
      %v307 = vmul.f32 %v305, 0.5
      %v308 = vlaneseq
      %v309 = vand.u32 %v308, 127
      %v310 = vadd.s32 %v309, 128
      %v311 = vmax.f32 %v258, %v259
      %312 = vmax.xlane.f32.xlu0 %v311
      %v313 = vpop.xlane.xlu0 %312
      %v314 = vsel %vm297, %v260, -inf
      %v315 = vsel %vm297, %v261, -inf
      %v316 = vmax.f32 %v314, %v315
      %317 = vmax.xlane.f32.xlu0 %v316
      %v318 = vpop.xlane.xlu0 %317
      %vm319 = vcmp.eq.f32.partialorder %v258, %v313
      %vm320 = vcmp.eq.f32.partialorder %v259, %v313
      %vm321 = vcmp.eq.f32.partialorder %v260, %v318
      %vm322 = vcmp.eq.f32.partialorder %v261, %v318
      %v323 = vsel %vm319, %v309, 256
      %v324 = vsel %vm320, %v310, 256
      %v325 = vsel %vm321, %v309, 256
      %v326 = vsel %vm322, %v310, 256
      %vm327 = vcmp.lt.s32.totalorder %v323, %v324
      %v328 = vsel %vm327, %v323, %v324
      %v329 = vand.u32 %v328, 65535
      %v330 = vshra.s32 %v328, 16
      %v331 = vcvt.s32.f32 %v329
      %v332 = vcvt.s32.f32 %v330
      %333 = vmin.xlane.f32.xlu0 %v332
      %v334 = vpop.xlane.xlu0 %333
      %vm335 = vcmp.eq.f32.partialorder %v332, %v334
      %v336 = vsel %vm335, %v331, inf
      %337 = vmin.xlane.f32.xlu0 %v336
      %v338 = vpop.xlane.xlu0 %337
      %v339 = vcvt.f32.s32 %v338
      %v340 = vcvt.f32.s32 %v334
      %v341 = vshll.u32 %v340, 16
      %v342 = vadd.s32 %v341, %v339
      %v343 = vsel %vm297, %v325, 2147483647
      %v344 = vsel %vm297, %v326, 2147483647
      %vm345 = vcmp.lt.s32.totalorder %v343, %v344
      %v346 = vsel %vm345, %v343, %v344
      %v347 = vand.u32 %v346, 65535
      %v348 = vshra.s32 %v346, 16
      %v349 = vcvt.s32.f32 %v347
      %v350 = vcvt.s32.f32 %v348
      %351 = vmin.xlane.f32.xlu0 %v350
      %v352 = vpop.xlane.xlu0 %351
      %vm353 = vcmp.eq.f32.partialorder %v350, %v352
      %v354 = vsel %vm353, %v349, inf
      %355 = vmin.xlane.f32.xlu0 %v354
      %v356 = vpop.xlane.xlu0 %355
      %v357 = vcvt.f32.s32 %v356
      %v358 = vcvt.f32.s32 %v352
      %v359 = vshll.u32 %v358, 16
      %v360 = vadd.s32 %v359, %v357
      %v361 = vcvt.s32.f32 %v342
      %v362 = vcvt.s32.f32 %v360
      %v363 = vmax.f32 %v262, %v263
      %364 = vmax.xlane.f32.xlu0 %v363
      %v365 = vpop.xlane.xlu0 %364
      %v366 = vsel %vm297, %v264, -inf
      %v367 = vsel %vm297, %v265, -inf
      %v368 = vmax.f32 %v366, %v367
      %369 = vmax.xlane.f32.xlu0 %v368
      %v370 = vpop.xlane.xlu0 %369
      %vm371 = vcmp.eq.f32.partialorder %v262, %v365
      %vm372 = vcmp.eq.f32.partialorder %v263, %v365
      %vm373 = vcmp.eq.f32.partialorder %v264, %v370
      %vm374 = vcmp.eq.f32.partialorder %v265, %v370
      %v375 = vsel %vm371, %v309, 256
      %v376 = vsel %vm372, %v310, 256
      %v377 = vsel %vm373, %v309, 256
      %v378 = vsel %vm374, %v310, 256
      %vm379 = vcmp.lt.s32.totalorder %v375, %v376
      %v380 = vsel %vm379, %v375, %v376
      %v381 = vand.u32 %v380, 65535
      %v382 = vshra.s32 %v380, 16
      %v383 = vcvt.s32.f32 %v381
      %v384 = vcvt.s32.f32 %v382
      %385 = vmin.xlane.f32.xlu0 %v384
      %v386 = vpop.xlane.xlu0 %385
      %vm387 = vcmp.eq.f32.partialorder %v384, %v386
      %v388 = vsel %vm387, %v383, inf
      %389 = vmin.xlane.f32.xlu0 %v388
      %v390 = vpop.xlane.xlu0 %389
      %v391 = vcvt.f32.s32 %v390
      %v392 = vcvt.f32.s32 %v386
      %v393 = vshll.u32 %v392, 16
      %v394 = vadd.s32 %v393, %v391
      %v395 = vsel %vm297, %v377, 2147483647
      %v396 = vsel %vm297, %v378, 2147483647
      %vm397 = vcmp.lt.s32.totalorder %v395, %v396
      %v398 = vsel %vm397, %v395, %v396
      %v399 = vand.u32 %v398, 65535
      %v400 = vshra.s32 %v398, 16
      %v401 = vcvt.s32.f32 %v399
      %v402 = vcvt.s32.f32 %v400
      %403 = vmin.xlane.f32.xlu0 %v402
      %v404 = vpop.xlane.xlu0 %403
      %vm405 = vcmp.eq.f32.partialorder %v402, %v404
      %v406 = vsel %vm405, %v401, inf
      %407 = vmin.xlane.f32.xlu0 %v406
      %v408 = vpop.xlane.xlu0 %407
      %v409 = vcvt.f32.s32 %v408
      %v410 = vcvt.f32.s32 %v404
      %v411 = vshll.u32 %v410, 16
      %v412 = vadd.s32 %v411, %v409
      %v413 = vcvt.s32.f32 %v394
      %v414 = vcvt.s32.f32 %v412
      %v415 = vmax.f32 %v266, %v267
      %416 = vmax.xlane.f32.xlu0 %v415
      %v417 = vpop.xlane.xlu0 %416
      %v418 = vsel %vm297, %v268, -inf
      %v419 = vsel %vm297, %v269, -inf
      %v420 = vmax.f32 %v418, %v419
      %421 = vmax.xlane.f32.xlu0 %v420
      %v422 = vpop.xlane.xlu0 %421
      %vm423 = vcmp.eq.f32.partialorder %v266, %v417
      %vm424 = vcmp.eq.f32.partialorder %v267, %v417
      %vm425 = vcmp.eq.f32.partialorder %v268, %v422
      %vm426 = vcmp.eq.f32.partialorder %v269, %v422
      %v427 = vsel %vm423, %v309, 256
      %v428 = vsel %vm424, %v310, 256
      %v429 = vsel %vm425, %v309, 256
      %v430 = vsel %vm426, %v310, 256
      %vm431 = vcmp.lt.s32.totalorder %v427, %v428
      %v432 = vsel %vm431, %v427, %v428
      %v433 = vand.u32 %v432, 65535
      %v434 = vshra.s32 %v432, 16
      %v435 = vcvt.s32.f32 %v433
      %v436 = vcvt.s32.f32 %v434
      %437 = vmin.xlane.f32.xlu0 %v436
      %v438 = vpop.xlane.xlu0 %437
      %vm439 = vcmp.eq.f32.partialorder %v436, %v438
      %v440 = vsel %vm439, %v435, inf
      %441 = vmin.xlane.f32.xlu0 %v440
      %v442 = vpop.xlane.xlu0 %441
      %v443 = vcvt.f32.s32 %v442
      %v444 = vcvt.f32.s32 %v438
      %v445 = vshll.u32 %v444, 16
      %v446 = vadd.s32 %v445, %v443
      %v447 = vsel %vm297, %v429, 2147483647
      %v448 = vsel %vm297, %v430, 2147483647
      %vm449 = vcmp.lt.s32.totalorder %v447, %v448
      %v450 = vsel %vm449, %v447, %v448
      %v451 = vand.u32 %v450, 65535
      %v452 = vshra.s32 %v450, 16
      %v453 = vcvt.s32.f32 %v451
      %v454 = vcvt.s32.f32 %v452
      %455 = vmin.xlane.f32.xlu0 %v454
      %v456 = vpop.xlane.xlu0 %455
      %vm457 = vcmp.eq.f32.partialorder %v454, %v456
      %v458 = vsel %vm457, %v453, inf
      %459 = vmin.xlane.f32.xlu0 %v458
      %v460 = vpop.xlane.xlu0 %459
      %v461 = vcvt.f32.s32 %v460
      %v462 = vcvt.f32.s32 %v456
      %v463 = vshll.u32 %v462, 16
      %v464 = vadd.s32 %v463, %v461
      %v465 = vcvt.s32.f32 %v446
      %v466 = vcvt.s32.f32 %v464
      %vm467 = vcmask 7168
      %468 = vst.msk [vmem:[%s257] sm:$0xff] %vm467, %v306
      %vm469 = vcmask 5120
      %470 = vst.msk [vmem:[%s257 + $0x8] sm:$0x3f] %vm469, %v307
      %vm471 = vcmask 15368
      %472 = vst.msk [vmem:[%s257] sm:$0xff] %vm471, %v313
      %vm473 = vcmask 13320
      %474 = vst.msk [vmem:[%s257 + $0x8] sm:$0x3f] %vm473, %v318
      %vm475 = vcmask 23568
      %476 = vst.msk [vmem:[%s257] sm:$0xff] %vm475, %v365
      %vm477 = vcmask 21520
      %478 = vst.msk [vmem:[%s257 + $0x8] sm:$0x3f] %vm477, %v370
      %vm479 = vcmask 31768
      %480 = vst.msk [vmem:[%s257] sm:$0xff] %vm479, %v417
      %vm481 = vcmask 29720
      %482 = vst.msk [vmem:[%s257 + $0x8] sm:$0x3f] %vm481, %v422
      %vm483 = vcmask 39968
      %484 = vst.msk [vmem:[%s257] sm:$0xff] %vm483, %v361
      %vm485 = vcmask 37920
      %486 = vst.msk [vmem:[%s257 + $0x8] sm:$0x3f] %vm485, %v362
      %vm487 = vcmask 48168
      %488 = vst.msk [vmem:[%s257] sm:$0xff] %vm487, %v413
      %vm489 = vcmask 46120
      %490 = vst.msk [vmem:[%s257 + $0x8] sm:$0x3f] %vm489, %v414
      %vm491 = vcmask 56368
      %492 = vst.msk [vmem:[%s257] sm:$0xff] %vm491, %v465
      %vm493 = vcmask 54320
      %494 = vst.msk [vmem:[%s257 + $0x8] sm:$0x3f] %vm493, %v466
      %p495 = scmp.lt.s32.totalorder %s15, 1
      %s496 = scalar_select %p495, %s15, 1
      %s497 = smul.addr %s496, 2
      %s498 = smul.addr %s497, 8
      %s499 = scalar_lea.vmem %s4, %s498
      // Predicated region
      $region37: #{joints_ocks_mse_loss.1} parent=35 // pred_check
        %p500 = pneg %p137
      $region38: #{joints_ocks_mse_loss.1} parent=35 // pred_check_branch
        %502 = sbr.rel (%p500) target = $region40
      $region39: #{joints_ocks_mse_loss.1} parent=35 // pred_region
        _
      $region40: #{joints_ocks_mse_loss.1} parent=35 // pred_fallthru
        _
    $region36: #{joints_ocks_mse_loss.1} parent=5 // pred_fallthru
      _
    %p503 = scmp.le.s32.totalorder 2, %s10
    // Predicated region
    $region41: #{joints_ocks_mse_loss.1} parent=5 // pred_check
      %p504 = pneg %p503
    $region42: #{joints_ocks_mse_loss.1} parent=5 // pred_check_branch
      %506 = sbr.rel (%p504) target = $region44
    $region43: #{joints_ocks_mse_loss.1} parent=5 // pred_region
      %s507 = ssub.s32 %s10, 2
      // Predicated region
      $region45: #{joints_ocks_mse_loss.1} parent=43 // pred_check
        %p508 = pneg %p143
      $region46: #{joints_ocks_mse_loss.1} parent=43 // pred_check_branch
        %510 = sbr.rel (%p508) target = $region48
      $region47: #{joints_ocks_mse_loss.1} parent=43 // pred_region
        %p511 = scmp.lt.s32.totalorder %s16, 1
        %s512 = scalar_select %p511, %s16, 1
        %s513 = smul.addr %s512, 2
        %s514 = smul.addr %s513, 8
        %s515 = scalar_lea.vmem %s4, %s514
      $region48: #{joints_ocks_mse_loss.1} parent=43 // pred_fallthru
        _
    $region44: #{joints_ocks_mse_loss.1} parent=5 // pred_fallthru
      _
  $region6: #{joints_ocks_mse_loss.1} parent=0 // loop_footer
    %s14 = sadd.s32 1, %s10
  $region7: #{joints_ocks_mse_loss.1} parent=0 // loop_footer_branch
    %9 = sbr.rel target = $region3
  $region8: #{joints_ocks_mse_loss.1} parent=0 // loop_exit
    _

</llo_original>
